<compile_context>
chip_gen: v6e
topology: v6e:2x2x1
jax: 0.10.0
libtpu: 0.0.40
codegen_flags: <defaults>
</compile_context>

<pallas_src>
import numpy as np

import jax
import jax.numpy as jnp
from jax import lax
from jax.experimental import pallas as pl
from jax.experimental.pallas import tpu as pltpu

KH = KW = 3            # kernel size
STRIDE = 2
PAD = 2
OUT_PAD = 1
C_IN = 32
H_IN = W_IN = 7
OH = (H_IN - 1) * STRIDE - 2 * PAD + KH + OUT_PAD   # = 12
OW = (W_IN - 1) * STRIDE - 2 * PAD + KW + OUT_PAD   # = 12
OH_PAD = 16            # per-kw row-block stride in the stage-1 output (vreg aligned)


def _scatter_selectors():
    """Compile-time 0/1 scatter selectors (numpy -> baked literals).

    ah[kh, ih, oh] = 1  iff  STRIDE*ih + kh - PAD == oh  (oh padded to OH_PAD)
    rw[kw, iw, ow] = 1  iff  STRIDE*iw + kw - PAD == ow
    """
    ah = np.zeros((KH, H_IN, OH_PAD), np.float32)
    for kh in range(KH):
        for ih in range(H_IN):
            oh = STRIDE * ih + kh - PAD
            if 0 <= oh < OH:
                ah[kh, ih, oh] = 1.0
    rw = np.zeros((KW, W_IN, OW), np.float32)
    for kw in range(KW):
        for iw in range(W_IN):
            ow = STRIDE * iw + kw - PAD
            if 0 <= ow < OW:
                rw[kw, iw, ow] = 1.0
    return ah, rw


_AH_NP, _RW_NP = _scatter_selectors()


def convt_gelu_kernel(x_ref, l_ref, r_ref, b_ref, o_ref):
    # x_ref: (224, 7)  VMEM -- x[ci*7 + ih, iw]          (bitcast view of NCHW input)
    # l_ref: (48, 224) VMEM -- L[kw*16 + oh, ci*7 + ih]  (weights (x) vertical scatter)
    # r_ref: (3, 7, 12) VMEM -- Rw[kw, iw, ow]            (horizontal scatter selectors)
    # b_ref: (1,)      SMEM -- bias
    # o_ref: (12, 12)  VMEM
    #
    # Stage 1 (MXU): channel contraction fused with the stride-2 vertical scatter.
    #   t[kw*16 + oh, iw] = sum_{ci,ih,kh} w[ci,kh,kw] * 1{2*ih+kh-2 == oh} * x[ci,ih,iw]
    t = jnp.dot(l_ref[...], x_ref[...], preferred_element_type=jnp.float32)   # (48, 7)

    # Stage 2 (MXU): horizontal stride-2 scatter, one independent tiny dot per kw.
    #   out[oh, ow] = sum_{kw,iw} t[kw*16 + oh, iw] * 1{2*iw+kw-2 == ow}
    v1 = (jnp.dot(t[0:OH_PAD], r_ref[0], preferred_element_type=jnp.float32)
          + jnp.dot(t[OH_PAD:2 * OH_PAD], r_ref[1], preferred_element_type=jnp.float32)
          + jnp.dot(t[2 * OH_PAD:3 * OH_PAD], r_ref[2], preferred_element_type=jnp.float32))
    v1 = v1 + b_ref[0]                                                        # (16, 12)

    # GELU (tanh approximation), written exactly as the torch graph.
    v2 = v1 * 0.5
    v3 = v1 * v1 * v1
    v4 = v3 * 0.044715
    v5 = v1 + v4
    v6 = v5 * 0.7978845608028654
    v7 = jnp.tanh(v6)
    v8 = v7 + 1.0
    v9 = v2 * v8                                                              # (16, 12)
    o_ref[...] = v9[0:OH, :]                                                  # drop 4 pad rows


@jax.jit
def model_forward(x_nchw, weight, bias):
    """x_nchw: (1, 32, 7, 7); weight: (32, 1, 3, 3) torch ConvTranspose2d layout; bias: (1,)."""
    # Activation: pure bitcast reshape of NCHW (no transpose HLO).
    x_r = x_nchw.astype(jnp.float32).reshape(C_IN * H_IN, W_IN)               # (224, 7)

    # Weight-side prep (tiny): fold the vertical scatter into the weight matrix.
    # L[kw*16 + oh, ci*7 + ih] = sum_kh w[ci, 0, kh, kw] * Ah[kh, ih, oh]
    ah = jnp.asarray(_AH_NP)                                                  # (3, 7, 16) const
    rw = jnp.asarray(_RW_NP)                                                  # (3, 7, 12) const
    w_ = weight.astype(jnp.float32)[:, 0, :, :]                               # (32, 3, 3) [ci,kh,kw]
    l_mat = jnp.einsum('ckw,kio->woci', w_, ah).reshape(KW * OH_PAD, C_IN * H_IN)  # (48, 224)
    bias = bias.astype(jnp.float32)

    out = pl.pallas_call(
        convt_gelu_kernel,
        out_shape=jax.ShapeDtypeStruct((OH, OW), jnp.float32),
        in_specs=[
            pl.BlockSpec(memory_space=pltpu.MemorySpace.VMEM),   # x_r
            pl.BlockSpec(memory_space=pltpu.MemorySpace.VMEM),   # l_mat
            pl.BlockSpec(memory_space=pltpu.MemorySpace.VMEM),   # rw selectors
            pl.BlockSpec(memory_space=pltpu.MemorySpace.SMEM),   # bias
        ],
        out_specs=pl.BlockSpec(memory_space=pltpu.MemorySpace.VMEM),
    )(x_r, l_mat, rw, bias)
    return out.reshape(1, 1, OH, OW)


def ref_forward(x_nchw, weight, bias):
    """Pure-JAX/XLA reference of the same forward (independent compute path)."""
    w_oihw_flipped = jnp.transpose(weight, (1, 0, 2, 3))[:, :, ::-1, ::-1]
    v1 = lax.conv_general_dilated(
        x_nchw, w_oihw_flipped,
        window_strides=(1, 1),
        padding=((KH - 1 - PAD, KH - 1 - PAD + OUT_PAD),
                 (KW - 1 - PAD, KW - 1 - PAD + OUT_PAD)),
        lhs_dilation=(STRIDE, STRIDE),
        dimension_numbers=("NCHW", "OIHW", "NCHW"),
    ) + bias.reshape(1, -1, 1, 1)
    v2 = v1 * 0.5
    v3 = v1 * v1 * v1
    v4 = v3 * 0.044715
    v5 = v1 + v4
    v6 = v5 * 0.7978845608028654
    v7 = jnp.tanh(v6)
    v8 = v7 + 1.0
    return v2 * v8


if __name__ == "__main__":
    key = jax.random.PRNGKey(0)
    kx, kw, kb = jax.random.split(key, 3)
    x1 = jax.random.normal(kx, (1, C_IN, H_IN, W_IN), jnp.float32)
    weight = jax.random.normal(kw, (C_IN, 1, KH, KW), jnp.float32) * 0.1
    bias = jax.random.normal(kb, (1,), jnp.float32) * 0.1

    out = model_forward(x1, weight, bias)
    out = jax.block_until_ready(out)

    ref = ref_forward(x1, weight, bias)
    assert out.shape == (1, 1, OH, OW), out.shape
    assert jnp.allclose(out, ref, rtol=1e-4, atol=1e-4), float(jnp.abs(out - ref).max())

    print("KERNEL_OK")
</pallas_src>

<mosaic_0001>
module attributes {stable_mosaic.version = 11 : i64} {
  func.func @convt_gelu_kernel(%arg0: memref<224x7xf32, #tpu.memory_space<vmem>>, %arg1: memref<48x224xf32, #tpu.memory_space<vmem>>, %arg2: memref<3x7x12xf32, #tpu.memory_space<vmem>>, %arg3: memref<1xf32, #tpu.memory_space<smem>>, %arg4: memref<12x12xf32, #tpu.memory_space<vmem>>) attributes {dimension_semantics = [], scalar_prefetch = 0 : i64, scratch_operands = 0 : i64, tpu.core_type = #tpu.core_type<tc>} {
    %c0 = arith.constant 0 : index
    %c0_0 = arith.constant 0 : index
    %0 = vector.load %arg1[%c0, %c0_0] : memref<48x224xf32, #tpu.memory_space<vmem>>, vector<48x224xf32>
    %c0_1 = arith.constant 0 : index
    %c0_2 = arith.constant 0 : index
    %1 = vector.load %arg0[%c0_1, %c0_2] : memref<224x7xf32, #tpu.memory_space<vmem>>, vector<224x7xf32>
    %cst = arith.constant dense<0.000000e+00> : vector<48x7xf32>
    %2 = tpu.matmul %0, %1, %cst {dimension_numbers = #tpu.dot_dimension_numbers<[1], [0], [0], [1], [0, 0, 1, 1], [], []>} : vector<48x224xf32>, vector<224x7xf32>, vector<48x7xf32> -> vector<48x7xf32>
    %3 = vector.extract_strided_slice %2 {offsets = [0, 0], sizes = [16, 7], strides = [1, 1]} : vector<48x7xf32> to vector<16x7xf32>
    %c0_3 = arith.constant 0 : index
    %c0_4 = arith.constant 0 : index
    %c0_5 = arith.constant 0 : index
    %4 = vector.load %arg2[%c0_3, %c0_4, %c0_5] : memref<3x7x12xf32, #tpu.memory_space<vmem>>, vector<1x7x12xf32>
    %5 = vector.shape_cast %4 : vector<1x7x12xf32> to vector<7x12xf32>
    %cst_6 = arith.constant dense<0.000000e+00> : vector<16x12xf32>
    %6 = tpu.matmul %3, %5, %cst_6 {dimension_numbers = #tpu.dot_dimension_numbers<[1], [0], [0], [1], [0, 0, 1, 1], [], []>} : vector<16x7xf32>, vector<7x12xf32>, vector<16x12xf32> -> vector<16x12xf32>
    %7 = vector.extract_strided_slice %2 {offsets = [16, 0], sizes = [16, 7], strides = [1, 1]} : vector<48x7xf32> to vector<16x7xf32>
    %c1 = arith.constant 1 : index
    %c0_7 = arith.constant 0 : index
    %c0_8 = arith.constant 0 : index
    %8 = vector.load %arg2[%c1, %c0_7, %c0_8] : memref<3x7x12xf32, #tpu.memory_space<vmem>>, vector<1x7x12xf32>
    %9 = vector.shape_cast %8 : vector<1x7x12xf32> to vector<7x12xf32>
    %cst_9 = arith.constant dense<0.000000e+00> : vector<16x12xf32>
    %10 = tpu.matmul %7, %9, %cst_9 {dimension_numbers = #tpu.dot_dimension_numbers<[1], [0], [0], [1], [0, 0, 1, 1], [], []>} : vector<16x7xf32>, vector<7x12xf32>, vector<16x12xf32> -> vector<16x12xf32>
    %11 = arith.addf %6, %10 : vector<16x12xf32>
    %12 = vector.extract_strided_slice %2 {offsets = [32, 0], sizes = [16, 7], strides = [1, 1]} : vector<48x7xf32> to vector<16x7xf32>
    %c2 = arith.constant 2 : index
    %c0_10 = arith.constant 0 : index
    %c0_11 = arith.constant 0 : index
    %13 = vector.load %arg2[%c2, %c0_10, %c0_11] : memref<3x7x12xf32, #tpu.memory_space<vmem>>, vector<1x7x12xf32>
    %14 = vector.shape_cast %13 : vector<1x7x12xf32> to vector<7x12xf32>
    %cst_12 = arith.constant dense<0.000000e+00> : vector<16x12xf32>
    %15 = tpu.matmul %12, %14, %cst_12 {dimension_numbers = #tpu.dot_dimension_numbers<[1], [0], [0], [1], [0, 0, 1, 1], [], []>} : vector<16x7xf32>, vector<7x12xf32>, vector<16x12xf32> -> vector<16x12xf32>
    %16 = arith.addf %11, %15 : vector<16x12xf32>
    %c0_13 = arith.constant 0 : index
    %17 = memref.load %arg3[%c0_13] : memref<1xf32, #tpu.memory_space<smem>>
    %18 = vector.broadcast %17 : f32 to vector<16x12xf32>
    %19 = arith.addf %16, %18 : vector<16x12xf32>
    %cst_14 = arith.constant 5.000000e-01 : f32
    %20 = vector.broadcast %cst_14 : f32 to vector<16x12xf32>
    %21 = arith.mulf %19, %20 : vector<16x12xf32>
    %22 = arith.mulf %19, %19 : vector<16x12xf32>
    %23 = arith.mulf %22, %19 : vector<16x12xf32>
    %cst_15 = arith.constant 4.471500e-02 : f32
    %24 = vector.broadcast %cst_15 : f32 to vector<16x12xf32>
    %25 = arith.mulf %23, %24 : vector<16x12xf32>
    %26 = arith.addf %19, %25 : vector<16x12xf32>
    %cst_16 = arith.constant 0.797884583 : f32
    %27 = vector.broadcast %cst_16 : f32 to vector<16x12xf32>
    %28 = arith.mulf %26, %27 : vector<16x12xf32>
    %29 = math.tanh %28 : vector<16x12xf32>
    %cst_17 = arith.constant 1.000000e+00 : f32
    %30 = vector.broadcast %cst_17 : f32 to vector<16x12xf32>
    %31 = arith.addf %29, %30 : vector<16x12xf32>
    %32 = arith.mulf %21, %31 : vector<16x12xf32>
    %33 = vector.extract_strided_slice %32 {offsets = [0, 0], sizes = [12, 12], strides = [1, 1]} : vector<16x12xf32> to vector<12x12xf32>
    %c0_18 = arith.constant 0 : index
    %c0_19 = arith.constant 0 : index
    %34 = vector.load %arg4[%c0_18, %c0_19] : memref<12x12xf32, #tpu.memory_space<vmem>>, vector<12x12xf32>
    tpu.vector_store %arg4[%c0_18, %c0_19], %33 {strides = array<i32>} : memref<12x12xf32, #tpu.memory_space<vmem>>, vector<12x12xf32>,
    return
  }
}

</mosaic_0001>

<llo_original>
// kernel: model_forward.1
$region0: #{model_forward.1}
  #allocation0 [shape = 'u32[]', space=smem, size = 0x4, offset = 0x4, fixed_abs, tag = 'smem constant byte address 0x4 - core index']
  #allocation1 [shape = 'u32[144,128]{1,0:T(1,128)}', space=vmem, size = 0x12000, scoped, tag = 'internal scratch']
  #allocation2 [shape = 'f32[1]{0:T(128)S(6)}', space=smem, size = 0x200, scoped, tag = 'scoped memory for model_forward.1']
  %s0 = inlined_call_operand.vmem [shape: f32[224,7], index: 0, kind: input, shape index: {}]
  %s1 = inlined_call_operand.vmem [shape: f32[48,224], index: 1, kind: input, shape index: {}]
  %s2 = inlined_call_operand.vmem [shape: f32[3,7,12], index: 2, kind: input, shape index: {}]
  %s3 = inlined_call_operand.<no memory space> [shape: f32[1], index: 3, kind: input, shape index: {}]
  %s4 = inlined_call_operand.vmem [shape: f32[12,12], index: 4, kind: output, shape index: {}]
  %s5 = sld [smem:[#allocation0]]
  $region26: #{model_forward.1} parent=0
    _
  %s7 = ssub.s32 1, %s5
  %s8 = scalar_select 0, %s7, %s5
  %9 = sst [smem:[#allocation2]] %s3
  // Predicated region
  $region2: #{model_forward.1} parent=0 // pred_check
    _
  $region3: #{model_forward.1} parent=0 // pred_check_branch
    %11 = sbr.rel (0) target = $region5
  $region4: #{model_forward.1} parent=0 // pred_region
    _
  $region5: #{model_forward.1} parent=0 // pred_fallthru
    _
  // Predicated region
  $region6: #{model_forward.1} parent=0 // pred_check
    _
  $region7: #{model_forward.1} parent=0 // pred_check_branch
    %13 = sbr.rel (0) target = $region9
  $region8: #{model_forward.1} parent=0 // pred_region
    _
  $region9: #{model_forward.1} parent=0 // pred_fallthru
    _
  // Predicated region
  $region10: #{model_forward.1} parent=0 // pred_check
    _
  $region11: #{model_forward.1} parent=0 // pred_check_branch
    %15 = sbr.rel (0) target = $region13
  $region12: #{model_forward.1} parent=0 // pred_region
    _
  $region13: #{model_forward.1} parent=0 // pred_fallthru
    _
  // Predicated region
  $region14: #{model_forward.1} parent=0 // pred_check
    _
  $region15: #{model_forward.1} parent=0 // pred_check_branch
    %17 = sbr.rel (0) target = $region17
  $region16: #{model_forward.1} parent=0 // pred_region
    _
  $region17: #{model_forward.1} parent=0 // pred_fallthru
    _
  %v18 = vld [vmem:[%s1] sm:$0xff]
  %v19 = vld [vmem:[%s1 + $0x8] sm:$0xff]
  %v20 = vld [vmem:[%s1 + $0x10] sm:$0xff]
  %v21 = vld [vmem:[%s1 + $0x18] sm:$0xff]
  %v22 = vld [vmem:[%s1 + $0x20] sm:$0xff]
  %v23 = vld [vmem:[%s1 + $0x28] sm:$0xff]
  %v24 = vld [vmem:[%s1 + $0x30] sm:$0xff]
  %v25 = vld [vmem:[%s1 + $0x38] sm:$0xff]
  %v26 = vld [vmem:[%s1 + $0x40] sm:$0xff]
  %v27 = vld [vmem:[%s1 + $0x48] sm:$0xff]
  %v28 = vld [vmem:[%s1 + $0x50] sm:$0xff]
  %v29 = vld [vmem:[%s1 + $0x58] sm:$0xff]
  %v30 = vld [vmem:[%s0] sm:$0xff]
  %v31 = vld [vmem:[%s0 + $0x8] sm:$0xff]
  %v32 = vld [vmem:[%s0 + $0x10] sm:$0xff]
  %v33 = vld [vmem:[%s0 + $0x18] sm:$0xff]
  %v34 = vld [vmem:[%s0 + $0x20] sm:$0xff]
  %v35 = vld [vmem:[%s0 + $0x28] sm:$0xff]
  %v36 = vld [vmem:[%s0 + $0x30] sm:$0xff]
  %v37 = vld [vmem:[%s0 + $0x38] sm:$0xff]
  %v38 = vld [vmem:[%s0 + $0x40] sm:$0xff]
  %v39 = vld [vmem:[%s0 + $0x48] sm:$0xff]
  %v40 = vld [vmem:[%s0 + $0x50] sm:$0xff]
  %v41 = vld [vmem:[%s0 + $0x58] sm:$0xff]
  %v42 = vld [vmem:[%s0 + $0x60] sm:$0xff]
  %v43 = vld [vmem:[%s0 + $0x68] sm:$0xff]
  %v44 = vld [vmem:[%s0 + $0x70] sm:$0xff]
  %v45 = vld [vmem:[%s0 + $0x78] sm:$0xff]
  %v46 = vld [vmem:[%s0 + $0x80] sm:$0xff]
  %v47 = vld [vmem:[%s0 + $0x88] sm:$0xff]
  %v48 = vld [vmem:[%s0 + $0x90] sm:$0xff]
  %v49 = vld [vmem:[%s0 + $0x98] sm:$0xff]
  %v50 = vld [vmem:[%s0 + $0xa0] sm:$0xff]
  %v51 = vld [vmem:[%s0 + $0xa8] sm:$0xff]
  %v52 = vld [vmem:[%s0 + $0xb0] sm:$0xff]
  %v53 = vld [vmem:[%s0 + $0xb8] sm:$0xff]
  %v54 = vld [vmem:[%s0 + $0xc0] sm:$0xff]
  %v55 = vld [vmem:[%s0 + $0xc8] sm:$0xff]
  %v56 = vld [vmem:[%s0 + $0xd0] sm:$0xff]
  %v57 = vld [vmem:[%s0 + $0xd8] sm:$0xff]
  %vm58 = vcmask 785408
  %v60 = vsel %vm58, %v19, 0
  %v63 = vsel %vm58, %v21, 0
  %v66 = vsel %vm58, %v23, 0
  %v69 = vsel %vm58, %v25, 0
  %v72 = vsel %vm58, %v27, 0
  %v75 = vsel %vm58, %v29, 0
  %77 = vmatprep.subr.mxu0 0.0
  %78 = vmatpush1.msra.mxu0 %v45
  %79 = vmatprep.subr.mxu0 0.0
  %80 = vmatpush1.msra.mxu0 %v44
  %81 = vmatprep.subr.mxu0 0.0
  %82 = vmatpush1.msra.mxu0 %v43
  %83 = vmatprep.subr.mxu0 0.0
  %84 = vmatpush1.msra.mxu0 %v42
  %85 = vmatprep.subr.mxu0 0.0
  %86 = vmatpush1.msra.mxu0 %v41
  %87 = vmatprep.subr.mxu0 0.0
  %88 = vmatpush1.msra.mxu0 %v40
  %89 = vmatprep.subr.mxu0 0.0
  %90 = vmatpush1.msra.mxu0 %v39
  %91 = vmatprep.subr.mxu0 0.0
  %92 = vmatpush1.msra.mxu0 %v38
  %93 = vmatprep.subr.mxu0 0.0
  %94 = vmatpush1.msra.mxu0 %v37
  %95 = vmatprep.subr.mxu0 0.0
  %96 = vmatpush1.msra.mxu0 %v36
  %97 = vmatprep.subr.mxu0 0.0
  %98 = vmatpush1.msra.mxu0 %v35
  %99 = vmatprep.subr.mxu0 0.0
  %100 = vmatpush1.msra.mxu0 %v34
  %101 = vmatprep.subr.mxu0 0.0
  %102 = vmatpush1.msra.mxu0 %v33
  %103 = vmatprep.subr.mxu0 0.0
  %104 = vmatpush1.msra.mxu0 %v32
  %105 = vmatprep.subr.mxu0 0.0
  %106 = vmatpush1.msra.mxu0 %v31
  %107 = vmatprep.subr.mxu0 0.0
  %108 = vmatpush1.msra.mxu0 %v30
  %109 = vmatprep.subr.mxu0 0.0
  %110 = vmatpush2.msra.mxu0 0.0
  %111 = vmatprep.subr.mxu0 0.0
  %112 = vmatpush2.msra.mxu0 0.0
  %113 = vmatprep.subr.mxu0 0.0
  %114 = vmatpush2.msra.mxu0 0.0
  %115 = vmatprep.subr.mxu0 0.0
  %116 = vmatpush2.msra.mxu0 0.0
  %117 = vmatprep.subr.mxu0 0.0
  %118 = vmatpush2.msra.mxu0 %v57
  %119 = vmatprep.subr.mxu0 0.0
  %120 = vmatpush2.msra.mxu0 %v56
  %121 = vmatprep.subr.mxu0 0.0
  %122 = vmatpush2.msra.mxu0 %v55
  %123 = vmatprep.subr.mxu0 0.0
  %124 = vmatpush2.msra.mxu0 %v54
  %125 = vmatprep.subr.mxu0 0.0
  %126 = vmatpush2.msra.mxu0 %v53
  %127 = vmatprep.subr.mxu0 0.0
  %128 = vmatpush2.msra.mxu0 %v52
  %129 = vmatprep.subr.mxu0 0.0
  %130 = vmatpush2.msra.mxu0 %v51
  %131 = vmatprep.subr.mxu0 0.0
  %132 = vmatpush2.msra.mxu0 %v50
  %133 = vmatprep.subr.mxu0 0.0
  %134 = vmatpush2.msra.mxu0 %v49
  %135 = vmatprep.subr.mxu0 0.0
  %136 = vmatpush2.msra.mxu0 %v48
  %137 = vmatprep.subr.mxu0 0.0
  %138 = vmatpush2.msra.mxu0 %v47
  %139 = vmatprep.subr.mxu0 0.0
  %140 = vmatpush2.msra.mxu0 %v46
  %141 = vmatprep.mubr.f32.mxu0 %v60
  %142 = vmatmul.mubr.f32.gmra.mxu0 %v18
  %v143 = vpop.f32.mrf.mxu0
  %v144 = vadd.f32 0.0, %v143
  %v145 = vpop.f32.mrf.mxu0
  %146 = vmatprep.mubr.f32.mxu0 %v63
  %147 = vmatmul.mubr.f32.gmra.mxu0 %v20
  %v148 = vpop.f32.mrf.mxu0
  %v149 = vadd.f32 0.0, %v148
  %v150 = vpop.f32.mrf.mxu0
  %151 = vmatprep.mubr.f32.mxu0 %v66
  %152 = vmatmul.mubr.f32.gmra.mxu0 %v22
  %v153 = vpop.f32.mrf.mxu0
  %v154 = vadd.f32 0.0, %v153
  %v155 = vpop.f32.mrf.mxu0
  %156 = vmatprep.mubr.f32.mxu0 %v69
  %157 = vmatmul.mubr.f32.gmra.mxu0 %v24
  %v158 = vpop.f32.mrf.mxu0
  %v159 = vadd.f32 0.0, %v158
  %v160 = vpop.f32.mrf.mxu0
  %161 = vmatprep.mubr.f32.mxu0 %v72
  %162 = vmatmul.mubr.f32.gmra.mxu0 %v26
  %v163 = vpop.f32.mrf.mxu0
  %v164 = vadd.f32 0.0, %v163
  %v165 = vpop.f32.mrf.mxu0
  %166 = vmatprep.mubr.f32.mxu0 %v75
  %167 = vmatmul.mubr.f32.gmra.mxu0 %v28
  %v168 = vpop.f32.mrf.mxu0
  %v169 = vadd.f32 0.0, %v168
  %v170 = vpop.f32.mrf.mxu0
  %171 = vdwg.mxu0
  %v172 = vld [vmem:[%s2] sm:$0x7f]
  %s173 = scalar_lea.vmem %s2, 8
  %v174 = vld [vmem:[%s173] sm:$0x7f]
  %vm175 = vcmask 56320
  %v177 = vsel %vm175, %v154, 0
  %v180 = vsel %vm175, %v159, 0
  %vm182 = vcmask 1046528
  %v184 = vsel %vm182, %v174, 0
  %186 = vmatprep.subr.mxu0 0.0
  %187 = vmatpush1.msra.mxu0 0.0
  %188 = vmatprep.subr.mxu0 0.0
  %189 = vmatpush1.msra.mxu0 0.0
  %190 = vmatprep.subr.mxu0 0.0
  %191 = vmatpush1.msra.mxu0 0.0
  %192 = vmatprep.subr.mxu0 0.0
  %193 = vmatpush1.msra.mxu0 0.0
  %194 = vmatprep.subr.mxu0 0.0
  %195 = vmatpush1.msra.mxu0 0.0
  %196 = vmatprep.subr.mxu0 0.0
  %197 = vmatpush1.msra.mxu0 0.0
  %198 = vmatprep.subr.mxu0 0.0
  %199 = vmatpush1.msra.mxu0 0.0
  %200 = vmatprep.subr.mxu0 0.0
  %201 = vmatpush1.msra.mxu0 0.0
  %202 = vmatprep.subr.mxu0 0.0
  %203 = vmatpush1.msra.mxu0 0.0
  %204 = vmatprep.subr.mxu0 0.0
  %205 = vmatpush1.msra.mxu0 0.0
  %206 = vmatprep.subr.mxu0 0.0
  %207 = vmatpush1.msra.mxu0 0.0
  %208 = vmatprep.subr.mxu0 0.0
  %209 = vmatpush1.msra.mxu0 0.0
  %210 = vmatprep.subr.mxu0 0.0
  %211 = vmatpush1.msra.mxu0 0.0
  %212 = vmatprep.subr.mxu0 0.0
  %213 = vmatpush1.msra.mxu0 0.0
  %214 = vmatprep.subr.mxu0 0.0
  %215 = vmatpush1.msra.mxu0 0.0
  %216 = vmatprep.subr.mxu0 0.0
  %217 = vmatpush1.msra.mxu0 %v184
  %218 = vmatprep.subr.mxu0 0.0
  %219 = vmatpush2.msra.mxu0 0.0
  %220 = vmatprep.subr.mxu0 0.0
  %221 = vmatpush2.msra.mxu0 0.0
  %222 = vmatprep.subr.mxu0 0.0
  %223 = vmatpush2.msra.mxu0 0.0
  %224 = vmatprep.subr.mxu0 0.0
  %225 = vmatpush2.msra.mxu0 0.0
  %226 = vmatprep.subr.mxu0 0.0
  %227 = vmatpush2.msra.mxu0 0.0
  %228 = vmatprep.subr.mxu0 0.0
  %229 = vmatpush2.msra.mxu0 0.0
  %230 = vmatprep.subr.mxu0 0.0
  %231 = vmatpush2.msra.mxu0 0.0
  %232 = vmatprep.subr.mxu0 0.0
  %233 = vmatpush2.msra.mxu0 0.0
  %234 = vmatprep.subr.mxu0 0.0
  %235 = vmatpush2.msra.mxu0 0.0
  %236 = vmatprep.subr.mxu0 0.0
  %237 = vmatpush2.msra.mxu0 0.0
  %238 = vmatprep.subr.mxu0 0.0
  %239 = vmatpush2.msra.mxu0 0.0
  %240 = vmatprep.subr.mxu0 0.0
  %241 = vmatpush2.msra.mxu0 0.0
  %242 = vmatprep.subr.mxu0 0.0
  %243 = vmatpush2.msra.mxu0 0.0
  %244 = vmatprep.subr.mxu0 0.0
  %245 = vmatpush2.msra.mxu0 0.0
  %246 = vmatprep.subr.mxu0 0.0
  %247 = vmatpush2.msra.mxu0 0.0
  %248 = vmatprep.subr.mxu0 0.0
  %249 = vmatpush2.msra.mxu0 0.0
  %250 = vmatprep.mubr.f32.mxu0 0.0
  %251 = vmatmul.mubr.f32.gmra.mxu0 %v177
  %v252 = vpop.f32.mrf.mxu0
  %v253 = vadd.f32 0.0, %v252
  %v254 = vpop.f32.mrf.mxu0
  %255 = vmatprep.mubr.f32.mxu0 0.0
  %256 = vmatmul.mubr.f32.gmra.mxu0 %v180
  %v257 = vpop.f32.mrf.mxu0
  %v258 = vadd.f32 0.0, %v257
  %v259 = vpop.f32.mrf.mxu0
  %260 = vdwg.mxu0
  %v262 = vsel %vm175, %v144, 0
  %v265 = vsel %vm175, %v149, 0
  %v268 = vsel %vm182, %v172, 0
  %270 = vmatprep.subr.mxu0 0.0
  %271 = vmatpush1.msra.mxu0 0.0
  %272 = vmatprep.subr.mxu0 0.0
  %273 = vmatpush1.msra.mxu0 0.0
  %274 = vmatprep.subr.mxu0 0.0
  %275 = vmatpush1.msra.mxu0 0.0
  %276 = vmatprep.subr.mxu0 0.0
  %277 = vmatpush1.msra.mxu0 0.0
  %278 = vmatprep.subr.mxu0 0.0
  %279 = vmatpush1.msra.mxu0 0.0
  %280 = vmatprep.subr.mxu0 0.0
  %281 = vmatpush1.msra.mxu0 0.0
  %282 = vmatprep.subr.mxu0 0.0
  %283 = vmatpush1.msra.mxu0 0.0
  %284 = vmatprep.subr.mxu0 0.0
  %285 = vmatpush1.msra.mxu0 0.0
  %286 = vmatprep.subr.mxu0 0.0
  %287 = vmatpush1.msra.mxu0 0.0
  %288 = vmatprep.subr.mxu0 0.0
  %289 = vmatpush1.msra.mxu0 0.0
  %290 = vmatprep.subr.mxu0 0.0
  %291 = vmatpush1.msra.mxu0 0.0
  %292 = vmatprep.subr.mxu0 0.0
  %293 = vmatpush1.msra.mxu0 0.0
  %294 = vmatprep.subr.mxu0 0.0
  %295 = vmatpush1.msra.mxu0 0.0
  %296 = vmatprep.subr.mxu0 0.0
  %297 = vmatpush1.msra.mxu0 0.0
  %298 = vmatprep.subr.mxu0 0.0
  %299 = vmatpush1.msra.mxu0 0.0
  %300 = vmatprep.subr.mxu0 0.0
  %301 = vmatpush1.msra.mxu0 %v268
  %302 = vmatprep.subr.mxu0 0.0
  %303 = vmatpush2.msra.mxu0 0.0
  %304 = vmatprep.subr.mxu0 0.0
  %305 = vmatpush2.msra.mxu0 0.0
  %306 = vmatprep.subr.mxu0 0.0
  %307 = vmatpush2.msra.mxu0 0.0
  %308 = vmatprep.subr.mxu0 0.0
  %309 = vmatpush2.msra.mxu0 0.0
  %310 = vmatprep.subr.mxu0 0.0
  %311 = vmatpush2.msra.mxu0 0.0
  %312 = vmatprep.subr.mxu0 0.0
  %313 = vmatpush2.msra.mxu0 0.0
  %314 = vmatprep.subr.mxu0 0.0
  %315 = vmatpush2.msra.mxu0 0.0
  %316 = vmatprep.subr.mxu0 0.0
  %317 = vmatpush2.msra.mxu0 0.0
  %318 = vmatprep.subr.mxu0 0.0
  %319 = vmatpush2.msra.mxu0 0.0
  %320 = vmatprep.subr.mxu0 0.0
  %321 = vmatpush2.msra.mxu0 0.0
  %322 = vmatprep.subr.mxu0 0.0
  %323 = vmatpush2.msra.mxu0 0.0
  %324 = vmatprep.subr.mxu0 0.0
  %325 = vmatpush2.msra.mxu0 0.0
  %326 = vmatprep.subr.mxu0 0.0
  %327 = vmatpush2.msra.mxu0 0.0
  %328 = vmatprep.subr.mxu0 0.0
  %329 = vmatpush2.msra.mxu0 0.0
  %330 = vmatprep.subr.mxu0 0.0
  %331 = vmatpush2.msra.mxu0 0.0
  %332 = vmatprep.subr.mxu0 0.0
  %333 = vmatpush2.msra.mxu0 0.0
  %334 = vmatprep.mubr.f32.mxu0 0.0
  %335 = vmatmul.mubr.f32.gmra.mxu0 %v262
  %v336 = vpop.f32.mrf.mxu0
  %v337 = vadd.f32 %v253, %v336
  %v338 = vpop.f32.mrf.mxu0
  %339 = vmatprep.mubr.f32.mxu0 0.0
  %340 = vmatmul.mubr.f32.gmra.mxu0 %v265
  %v341 = vpop.f32.mrf.mxu0
  %v342 = vadd.f32 %v258, %v341
  %v343 = vpop.f32.mrf.mxu0
  %344 = vdwg.mxu0
  %s345 = scalar_lea.vmem %s2, 16
  %v346 = vld [vmem:[%s345] sm:$0x7f]
  %v348 = vsel %vm175, %v164, 0
  %v351 = vsel %vm175, %v169, 0
  %v354 = vsel %vm182, %v346, 0
  %356 = vmatprep.subr.mxu0 0.0
  %357 = vmatpush1.msra.mxu0 0.0
  %358 = vmatprep.subr.mxu0 0.0
  %359 = vmatpush1.msra.mxu0 0.0
  %360 = vmatprep.subr.mxu0 0.0
  %361 = vmatpush1.msra.mxu0 0.0
  %362 = vmatprep.subr.mxu0 0.0
  %363 = vmatpush1.msra.mxu0 0.0
  %364 = vmatprep.subr.mxu0 0.0
  %365 = vmatpush1.msra.mxu0 0.0
  %366 = vmatprep.subr.mxu0 0.0
  %367 = vmatpush1.msra.mxu0 0.0
  %368 = vmatprep.subr.mxu0 0.0
  %369 = vmatpush1.msra.mxu0 0.0
  %370 = vmatprep.subr.mxu0 0.0
  %371 = vmatpush1.msra.mxu0 0.0
  %372 = vmatprep.subr.mxu0 0.0
  %373 = vmatpush1.msra.mxu0 0.0
  %374 = vmatprep.subr.mxu0 0.0
  %375 = vmatpush1.msra.mxu0 0.0
  %376 = vmatprep.subr.mxu0 0.0
  %377 = vmatpush1.msra.mxu0 0.0
  %378 = vmatprep.subr.mxu0 0.0
  %379 = vmatpush1.msra.mxu0 0.0
  %380 = vmatprep.subr.mxu0 0.0
  %381 = vmatpush1.msra.mxu0 0.0
  %382 = vmatprep.subr.mxu0 0.0
  %383 = vmatpush1.msra.mxu0 0.0
  %384 = vmatprep.subr.mxu0 0.0
  %385 = vmatpush1.msra.mxu0 0.0
  %386 = vmatprep.subr.mxu0 0.0
  %387 = vmatpush1.msra.mxu0 %v354
  %388 = vmatprep.subr.mxu0 0.0
  %389 = vmatpush2.msra.mxu0 0.0
  %390 = vmatprep.subr.mxu0 0.0
  %391 = vmatpush2.msra.mxu0 0.0
  %392 = vmatprep.subr.mxu0 0.0
  %393 = vmatpush2.msra.mxu0 0.0
  %394 = vmatprep.subr.mxu0 0.0
  %395 = vmatpush2.msra.mxu0 0.0
  %396 = vmatprep.subr.mxu0 0.0
  %397 = vmatpush2.msra.mxu0 0.0
  %398 = vmatprep.subr.mxu0 0.0
  %399 = vmatpush2.msra.mxu0 0.0
  %400 = vmatprep.subr.mxu0 0.0
  %401 = vmatpush2.msra.mxu0 0.0
  %402 = vmatprep.subr.mxu0 0.0
  %403 = vmatpush2.msra.mxu0 0.0
  %404 = vmatprep.subr.mxu0 0.0
  %405 = vmatpush2.msra.mxu0 0.0
  %406 = vmatprep.subr.mxu0 0.0
  %407 = vmatpush2.msra.mxu0 0.0
  %408 = vmatprep.subr.mxu0 0.0
  %409 = vmatpush2.msra.mxu0 0.0
  %410 = vmatprep.subr.mxu0 0.0
  %411 = vmatpush2.msra.mxu0 0.0
  %412 = vmatprep.subr.mxu0 0.0
  %413 = vmatpush2.msra.mxu0 0.0
  %414 = vmatprep.subr.mxu0 0.0
  %415 = vmatpush2.msra.mxu0 0.0
  %416 = vmatprep.subr.mxu0 0.0
  %417 = vmatpush2.msra.mxu0 0.0
  %418 = vmatprep.subr.mxu0 0.0
  %419 = vmatpush2.msra.mxu0 0.0
  %420 = vmatprep.mubr.f32.mxu0 0.0
  %421 = vmatmul.mubr.f32.gmra.mxu0 %v348
  %v422 = vpop.f32.mrf.mxu0
  %v423 = vadd.f32 0.0, %v422
  %v424 = vpop.f32.mrf.mxu0
  %425 = vmatprep.mubr.f32.mxu0 0.0
  %426 = vmatmul.mubr.f32.gmra.mxu0 %v351
  %v427 = vpop.f32.mrf.mxu0
  %v428 = vadd.f32 0.0, %v427
  %v429 = vpop.f32.mrf.mxu0
  %430 = vdwg.mxu0
  %v431 = vadd.f32 %v337, %v423
  %v432 = vadd.f32 %v342, %v428
  %s433 = sld [smem:[#allocation2]]
  %v434 = vstv %s433
  %v435 = vadd.f32 %v431, %v434
  %v436 = vadd.f32 %v432, %v434
  %v437 = vmul.f32 %v435, 0.5
  %v438 = vmul.f32 %v436, 0.5
  %v439 = vmul.f32 %v435, %v435
  %v440 = vmul.f32 %v436, %v436
  %v441 = vmul.f32 %v439, %v435
  %v442 = vmul.f32 %v440, %v436
  %v443 = vmul.f32 %v441, 0.044715
  %v444 = vmul.f32 %v442, 0.044715
  %v445 = vadd.f32 %v435, %v443
  %v446 = vadd.f32 %v436, %v444
  %v447 = vmul.f32 %v445, 0.7978846
  %v448 = vmul.f32 %v446, 0.7978846
  %v449 = vtanh.pop %v447
  %v450 = vtanh.pop %v448
  %v451 = vadd.f32 %v449, 1.0
  %v452 = vadd.f32 %v450, 1.0
  %v453 = vmul.f32 %v437, %v451
  %v454 = vmul.f32 %v438, %v452
  %vm455 = vcmask 97280
  %456 = vst.msk [vmem:[%s4] sm:$0xff] %vm455, %v453
  %vm457 = vcmask 93184
  %458 = vst.msk [vmem:[%s4 + $0x8] sm:$0xf] %vm457, %v454
  // Predicated region
  $region18: #{model_forward.1} parent=0 // pred_check
    _
  $region19: #{model_forward.1} parent=0 // pred_check_branch
    %460 = sbr.rel (0) target = $region21
  $region20: #{model_forward.1} parent=0 // pred_region
    _
  $region21: #{model_forward.1} parent=0 // pred_fallthru
    _
  // Predicated region
  $region22: #{model_forward.1} parent=0 // pred_check
    _
  $region23: #{model_forward.1} parent=0 // pred_check_branch
    %462 = sbr.rel (0) target = $region25
  $region24: #{model_forward.1} parent=0 // pred_region
    _
  $region25: #{model_forward.1} parent=0 // pred_fallthru
    _

</llo_original>
